<compile_context>
chip_gen: v7x
topology: tpu7x:2x2x1
jax: 0.10.0
libtpu: 0.0.40
codegen_flags: <defaults>
</compile_context>

<pallas_src>
import functools
import math

import numpy as np
import jax
import jax.numpy as jnp
from jax import lax
from jax.experimental import pallas as pl
from jax.experimental.pallas import tpu as pltpu


# ----------------------------- constant setup -------------------------------
def _round_up(x, m):
    return ((x + m - 1) // m) * m


def _povey_window(N):
    a = 2.0 * math.pi / N
    n = np.arange(N, dtype=np.float64)
    return ((0.5 - 0.5 * np.cos(a * n)) ** 0.85).astype(np.float32)


def _mel_kaldi_fb(num_filters, fft_length, fs, low_freq, high_freq):
    """Kaldi-style triangular mel filterbank, shape (fft_length//2+1, num_filters)."""
    if high_freq <= 0:
        high_freq = fs / 2.0 + high_freq

    def mel(f):
        return 1127.0 * np.log(1.0 + np.asarray(f, dtype=np.float64) / 700.0)

    mel_low = mel(low_freq)
    mel_high = mel(high_freq)
    delta = (mel_high - mel_low) / (num_filters + 1)
    nbins = fft_length // 2 + 1
    fft_freqs = np.arange(nbins, dtype=np.float64) * fs / fft_length
    mel_f = mel(fft_freqs)
    fb = np.zeros((nbins, num_filters), dtype=np.float32)
    for j in range(num_filters):
        left = mel_low + j * delta
        center = left + delta
        right = center + delta
        up = (mel_f - left) / (center - left)
        down = (right - mel_f) / (right - center)
        fb[:, j] = np.maximum(0.0, np.minimum(up, down)).astype(np.float32)
    return fb


def _windowed_dft_matrix(N, fft_length, KP, NBP, nbins_used):
    """Window-folded real-DFT basis [win*cos | -win*sin], zero-padded to (KP, 2*NBP).

    frame @ this == [Re(rFFT(win*frame_zero_padded)), Im(rFFT(...))] over the
    first `nbins_used` bins.  Zero rows >= N annihilate garbage in the padded
    frame columns (load-bearing for the in-kernel preemphasis roll).
    """
    win = _povey_window(N).astype(np.float64)
    n = np.arange(N, dtype=np.float64)[:, None]
    k = np.arange(nbins_used, dtype=np.float64)[None, :]
    ang = 2.0 * np.pi * n * k / fft_length
    cos_w = win[:, None] * np.cos(ang)
    sin_w = win[:, None] * (-np.sin(ang))
    dft = np.zeros((KP, 2 * NBP), dtype=np.float32)
    dft[:N, :nbins_used] = cos_w.astype(np.float32)
    dft[:N, NBP:NBP + nbins_used] = sin_w.astype(np.float32)
    return dft


def _padded_fb(fb_full, nbins_used, NBP, out_lanes, num_filters):
    """Mel filterbank padded to (NBP, out_lanes); column 0 reserved for log-energy."""
    fbp = np.zeros((NBP, out_lanes), dtype=np.float32)
    fbp[:nbins_used, 1:1 + num_filters] = fb_full[:nbins_used]
    return fbp


def _split_hi_lo(a_f32):
    """Split an f32 array into bf16 hi/lo so hi+lo carries ~16 mantissa bits."""
    hi = a_f32.astype(jnp.bfloat16)
    lo = (a_f32 - hi.astype(jnp.float32)).astype(jnp.bfloat16)
    return hi, lo


# ------------------------------- Pallas kernel ------------------------------
def _logfb_kernel(frames_ref, dft_hi_ref, dft_lo_ref, fb_hi_ref, fb_lo_ref,
                  out_ref, *, preemph):
    # frames_ref : (TF, KP) f32   cols 0..N-1 = raw frame, col KP-1 = previous
    #                             waveform sample, remaining cols exact zeros.
    # dft_*_ref  : (KP, 2*NBP) bf16  window-folded [cos | -sin] basis, hi/lo halves.
    # fb_*_ref   : (NBP, 128) bf16   mel filterbank hi/lo, col 0 zero (energy slot).
    # out_ref    : (TF, 128) f32    col 0 = raw log-energy, cols 1..NF = log-mel.
    raw = frames_ref[...]                                     # (TF, KP) f32

    # Raw log-energy: padded cols are exact zeros; the last col holds the
    # previous sample, so subtract its square back out of the lane reduction.
    prev = raw[:, -1:]
    energy = jnp.sum(raw * raw, axis=-1, keepdims=True) - prev * prev
    loge = jnp.log(energy + 1e-15)                            # (TF, 1)

    # Preemphasis x[n] - c*x[n-1]: the previous sample sits in the last lane,
    # so a 1-lane roll (XLU slot, overlaps with MXU work) brings it to lane 0.
    if preemph != 0.0:
        pe = raw - preemph * pltpu.roll(raw, shift=1, axis=1)
    else:
        pe = raw
    # Garbage in pe's padded columns multiplies zero rows of the basis -> 0.

    # Windowed rFFT as bf16x3 MXU passes with f32 accumulation:
    # y ~= pe_hi@dft_hi + pe_lo@dft_hi + pe_hi@dft_lo  (lo*lo term negligible).
    pe_hi = pe.astype(jnp.bfloat16)
    pe_lo = (pe - pe_hi.astype(jnp.float32)).astype(jnp.bfloat16)
    y = jnp.dot(pe_hi, dft_hi_ref[...], preferred_element_type=jnp.float32)
    y = y + jnp.dot(pe_lo, dft_hi_ref[...], preferred_element_type=jnp.float32)
    y = y + jnp.dot(pe_hi, dft_lo_ref[...], preferred_element_type=jnp.float32)

    nbp = dft_hi_ref.shape[1] // 2
    xr = y[:, :nbp]                                           # slice at 128-lane boundary
    xi = y[:, nbp:]
    pow_spec = xr * xr + xi * xi                              # (TF, NBP) f32

    # Mel projection, same bf16x3 scheme (positive sums; accuracy ~f32).
    p_hi = pow_spec.astype(jnp.bfloat16)
    p_lo = (pow_spec - p_hi.astype(jnp.float32)).astype(jnp.bfloat16)
    mel = jnp.dot(p_hi, fb_hi_ref[...], preferred_element_type=jnp.float32)
    mel = mel + jnp.dot(p_lo, fb_hi_ref[...], preferred_element_type=jnp.float32)
    mel = mel + jnp.dot(p_hi, fb_lo_ref[...], preferred_element_type=jnp.float32)
    logmel = jnp.log(mel + 1e-10)                             # (TF, 128)

    # Lane-dense 128-wide unmasked store; merge log-energy into column 0.
    col = lax.broadcasted_iota(jnp.int32, logmel.shape, 1)
    out_ref[...] = jnp.where(col == 0, loge, logmel)


# --------------------------------- wrapper ----------------------------------
def wav2logfilterbank(x, *, fs=8000, frame_length=25, frame_shift=10,
                      fft_length=256, remove_dc_offset=True, preemph_coeff=0.97,
                      dither=1.0, low_freq=20.0, high_freq=0.0, num_filters=23,
                      use_energy=True, dither_key=None):
    B, S = x.shape
    N = int(math.floor(frame_length * fs / 1000))
    shift = int(math.floor(frame_shift * fs / 1000))
    nbins = fft_length // 2 + 1
    assert N <= fft_length
    assert num_filters + 1 <= 128

    x = x.astype(jnp.float32)
    if dither != 0.0:
        x = x + dither * jax.random.normal(dither_key, x.shape, dtype=jnp.float32)
    if remove_dc_offset:
        x = x - jnp.mean(x, axis=1, keepdims=True)

    # --------- constants: mel bank (with Nyquist-drop) + folded DFT ---------
    fb_full = _mel_kaldi_fb(num_filters, fft_length, fs, low_freq, high_freq)
    if np.all(fb_full[-1, :] == 0.0):
        # Kaldi-style bank with high_freq <= fs/2: Nyquist row is exactly zero,
        # so the last FFT bin is dead work and can be dropped from both matmuls.
        nbins_used = nbins - 1
    else:
        nbins_used = nbins
    assert np.all(fb_full[nbins_used:, :] == 0.0), \
        "dropped FFT bins must have all-zero filterbank rows"

    KP = _round_up(N + 1, 128)             # lane-padded frame width  (256)
    NBP = _round_up(nbins_used, 128)       # lane-padded bin count    (128)
    OUT_LANES = 128

    dft = jnp.asarray(_windowed_dft_matrix(N, fft_length, KP, NBP, nbins_used))
    fbp = jnp.asarray(_padded_fb(fb_full, nbins_used, NBP, OUT_LANES, num_filters))
    dft_hi, dft_lo = _split_hi_lo(dft)
    fb_hi, fb_lo = _split_hi_lo(fbp)

    # --------------------- snip_edges=True framing (fused) ------------------
    # TODO(synk): longer term, pass the waveform via memory_space=pl.ANY and
    # build the overlapping frames inside the kernel (manual DMA) to cut the
    # remaining slab write+read HBM traffic.
    M = 1 + (S - N) // shift
    F = B * M
    F8 = _round_up(F, 8)

    # Frame tile: >=2 grid steps when possible (keeps both v7x TensorCores
    # busy; neutral on v5e/v6e), capped at 1024 rows (~<8 MiB live per step,
    # safe under the 32 MiB scoped VMEM on every generation).
    TF = min(1024, _round_up(max(8, -(-F8 // 2)), 8))
    F_pad = _round_up(F, TF)

    # Single fused gather building the padded (F_pad, KP) slab directly:
    # cols 0..N-1 = frame samples, cols N..KP-2 = exact zeros (gathered from a
    # zero sentinel sample), col KP-1 = previous waveform sample (replicate at
    # the left edge).  Padded rows are clamped to the last valid frame.
    Sp = S + 1
    x_flat = jnp.concatenate([x, jnp.zeros((B, 1), jnp.float32)], axis=1).reshape(-1)
    f_idx = jnp.minimum(jnp.arange(F_pad, dtype=jnp.int32), F - 1)
    b_idx = f_idx // M
    start = (f_idx % M) * shift                               # (F_pad,)
    col = jnp.arange(KP, dtype=jnp.int32)                     # (KP,)
    off = jnp.where(col[None, :] < N,
                    start[:, None] + col[None, :],
                    jnp.where(col[None, :] == KP - 1,
                              jnp.maximum(start[:, None] - 1, 0),
                              S))                              # S -> zero sentinel
    slab = x_flat[b_idx[:, None] * Sp + off]                   # (F_pad, KP) f32

    grid = (F_pad // TF,)
    flops = int(F_pad * (3 * 2 * KP * 2 * NBP + 3 * 2 * NBP * OUT_LANES
                         + 6 * KP + 4 * NBP))
    bytes_accessed = int(4 * (F_pad * KP + F_pad * OUT_LANES)
                         + 2 * 2 * (KP * 2 * NBP + NBP * OUT_LANES))

    out = pl.pallas_call(
        functools.partial(_logfb_kernel, preemph=float(preemph_coeff)),
        out_shape=jax.ShapeDtypeStruct((F_pad, OUT_LANES), jnp.float32),
        grid=grid,
        in_specs=[
            pl.BlockSpec((TF, KP), lambda i: (i, 0)),
            pl.BlockSpec((KP, 2 * NBP), lambda i: (0, 0)),
            pl.BlockSpec((KP, 2 * NBP), lambda i: (0, 0)),
            pl.BlockSpec((NBP, OUT_LANES), lambda i: (0, 0)),
            pl.BlockSpec((NBP, OUT_LANES), lambda i: (0, 0)),
        ],
        out_specs=pl.BlockSpec((TF, OUT_LANES), lambda i: (i, 0)),
        compiler_params=pltpu.CompilerParams(
            dimension_semantics=("parallel",),
            vmem_limit_bytes=32 * 1024 * 1024),
        cost_estimate=pl.CostEstimate(
            flops=flops,
            transcendentals=int(F_pad * (OUT_LANES + 1)),
            bytes_accessed=bytes_accessed),
    )(slab, dft_hi, dft_lo, fb_hi, fb_lo)

    out = out[:F]
    if use_energy:
        return out[:, :1 + num_filters].reshape(B, M, 1 + num_filters)
    return out[:, 1:1 + num_filters].reshape(B, M, num_filters)


# ------------------------------ pure-JAX reference --------------------------
def _reference(x, *, fs, frame_length, frame_shift, fft_length,
               remove_dc_offset, preemph_coeff, dither, low_freq, high_freq,
               num_filters, use_energy, dither_key):
    B, S = x.shape
    N = int(math.floor(frame_length * fs / 1000))
    shift = int(math.floor(frame_shift * fs / 1000))
    x = x.astype(jnp.float32)
    if dither != 0.0:
        x = x + dither * jax.random.normal(dither_key, x.shape, dtype=jnp.float32)
    if remove_dc_offset:
        x = x - jnp.mean(x, axis=1, keepdims=True)
    M = 1 + (S - N) // shift
    idx = jnp.arange(M)[:, None] * shift + jnp.arange(N)[None, :]
    frames_raw = x[:, idx]
    loge = jnp.log(jnp.sum(frames_raw ** 2, axis=-1) + 1e-15)
    if preemph_coeff != 0.0:
        x_prev = jnp.concatenate([x[:, :1], x[:, :-1]], axis=1)  # replicate-pad left
        x = x - preemph_coeff * x_prev
    frames_pe = x[:, idx]
    window = jnp.asarray(_povey_window(N))
    xw = frames_pe * window
    xw = jnp.pad(xw, ((0, 0), (0, 0), (0, fft_length - N)))
    X = jnp.fft.rfft(xw, axis=-1)
    pow_spec = jnp.abs(X) ** 2
    fb = jnp.asarray(_mel_kaldi_fb(num_filters, fft_length, fs, low_freq, high_freq))
    out = jnp.log(jnp.matmul(pow_spec.astype(jnp.float32), fb) + 1e-10)
    if use_energy:
        out = jnp.concatenate([loge[..., None], out], axis=-1)
    return out


# ----------------------------------- main -----------------------------------
if __name__ == "__main__":
    cfg = dict(fs=8000, frame_length=25, frame_shift=10, fft_length=256,
               remove_dc_offset=True, preemph_coeff=0.97, dither=1.0,
               low_freq=20.0, high_freq=0.0, num_filters=23, use_energy=True)

    key = jax.random.PRNGKey(0)
    k_wav, k_dither = jax.random.split(key)
    # batch=2, num_samples=1000 -> 11 frames of 200 samples (fs=8 kHz)
    x = jax.random.normal(k_wav, (2, 1000), dtype=jnp.float32)

    out = wav2logfilterbank(x, dither_key=k_dither, **cfg)
    out = jax.block_until_ready(out)

    ref = jax.block_until_ready(_reference(x, dither_key=k_dither, **cfg))

    assert out.shape == (2, 11, cfg["num_filters"] + 1), out.shape
    assert bool(jnp.all(jnp.isfinite(out)))
    assert bool(jnp.allclose(out, ref, atol=1e-3, rtol=1e-3)), \
        float(jnp.max(jnp.abs(out - ref)))
    print("KERNEL_OK")
</pallas_src>

<mosaic_0001>
module attributes {stable_mosaic.version = 11 : i64} {
  func.func @_logfb_kernel(%arg0: i32, %arg1: memref<16x256xf32, #tpu.memory_space<vmem>>, %arg2: memref<256x256xbf16, #tpu.memory_space<vmem>>, %arg3: memref<256x256xbf16, #tpu.memory_space<vmem>>, %arg4: memref<128x128xbf16, #tpu.memory_space<vmem>>, %arg5: memref<128x128xbf16, #tpu.memory_space<vmem>>, %arg6: memref<16x128xf32, #tpu.memory_space<vmem>>) attributes {dimension_semantics = [#tpu.dimension_semantics<parallel>], iteration_bounds = array<i64: 2>, scalar_prefetch = 0 : i64, scratch_operands = 0 : i64, tpu.core_type = #tpu.core_type<tc>, window_params = [{transform_indices = @transform_0, window_bounds = array<i64: 16, 256>}, {pipeline_mode = #tpu.pipeline_mode<synchronous>, transform_indices = @transform_1, window_bounds = array<i64: 256, 256>}, {pipeline_mode = #tpu.pipeline_mode<synchronous>, transform_indices = @transform_2, window_bounds = array<i64: 256, 256>}, {pipeline_mode = #tpu.pipeline_mode<synchronous>, transform_indices = @transform_3, window_bounds = array<i64: 128, 128>}, {pipeline_mode = #tpu.pipeline_mode<synchronous>, transform_indices = @transform_4, window_bounds = array<i64: 128, 128>}, {transform_indices = @transform_5, window_bounds = array<i64: 16, 128>}]} {
    %c0 = arith.constant 0 : index
    %c0_0 = arith.constant 0 : index
    %0 = vector.load %arg1[%c0, %c0_0] : memref<16x256xf32, #tpu.memory_space<vmem>>, vector<16x256xf32>
    %1 = vector.extract_strided_slice %0 {offsets = [0, 255], sizes = [16, 1], strides = [1, 1]} : vector<16x256xf32> to vector<16x1xf32>
    %2 = arith.mulf %0, %0 : vector<16x256xf32>
    %cst = arith.constant dense<0.000000e+00> : vector<16xf32>
    %3 = vector.multi_reduction <add>, %2, %cst [1] : vector<16x256xf32> to vector<16xf32>
    %4 = vector.shape_cast %3 : vector<16xf32> to vector<16x1xf32>
    %5 = arith.mulf %1, %1 : vector<16x1xf32>
    %6 = arith.subf %4, %5 : vector<16x1xf32>
    %cst_1 = arith.constant 1.000000e-15 : f32
    %7 = vector.broadcast %cst_1 : f32 to vector<16x1xf32>
    %8 = arith.addf %6, %7 : vector<16x1xf32>
    %9 = math.log %8 : vector<16x1xf32>
    %c1_i32 = arith.constant 1 : i32
    %10 = tpu.dynamic_rotate %0 by %c1_i32 dim 1 : vector<16x256xf32>, i32 -> vector<16x256xf32>
    %cst_2 = arith.constant 9.700000e-01 : f32
    %11 = vector.broadcast %cst_2 : f32 to vector<16x256xf32>
    %12 = arith.mulf %11, %10 : vector<16x256xf32>
    %13 = arith.subf %0, %12 : vector<16x256xf32>
    %14 = arith.truncf %13 : vector<16x256xf32> to vector<16x256xbf16>
    %15 = arith.extf %14 : vector<16x256xbf16> to vector<16x256xf32>
    %16 = arith.subf %13, %15 : vector<16x256xf32>
    %17 = arith.truncf %16 : vector<16x256xf32> to vector<16x256xbf16>
    %c0_3 = arith.constant 0 : index
    %c0_4 = arith.constant 0 : index
    %18 = vector.load %arg2[%c0_3, %c0_4] : memref<256x256xbf16, #tpu.memory_space<vmem>>, vector<256x256xbf16>
    %cst_5 = arith.constant dense<0.000000e+00> : vector<16x256xf32>
    %19 = tpu.matmul %14, %18, %cst_5 {dimension_numbers = #tpu.dot_dimension_numbers<[1], [0], [0], [1], [0, 0, 1, 1], [], []>} : vector<16x256xbf16>, vector<256x256xbf16>, vector<16x256xf32> -> vector<16x256xf32>
    %c0_6 = arith.constant 0 : index
    %c0_7 = arith.constant 0 : index
    %20 = vector.load %arg2[%c0_6, %c0_7] : memref<256x256xbf16, #tpu.memory_space<vmem>>, vector<256x256xbf16>
    %cst_8 = arith.constant dense<0.000000e+00> : vector<16x256xf32>
    %21 = tpu.matmul %17, %20, %cst_8 {dimension_numbers = #tpu.dot_dimension_numbers<[1], [0], [0], [1], [0, 0, 1, 1], [], []>} : vector<16x256xbf16>, vector<256x256xbf16>, vector<16x256xf32> -> vector<16x256xf32>
    %22 = arith.addf %19, %21 : vector<16x256xf32>
    %c0_9 = arith.constant 0 : index
    %c0_10 = arith.constant 0 : index
    %23 = vector.load %arg3[%c0_9, %c0_10] : memref<256x256xbf16, #tpu.memory_space<vmem>>, vector<256x256xbf16>
    %cst_11 = arith.constant dense<0.000000e+00> : vector<16x256xf32>
    %24 = tpu.matmul %14, %23, %cst_11 {dimension_numbers = #tpu.dot_dimension_numbers<[1], [0], [0], [1], [0, 0, 1, 1], [], []>} : vector<16x256xbf16>, vector<256x256xbf16>, vector<16x256xf32> -> vector<16x256xf32>
    %25 = arith.addf %22, %24 : vector<16x256xf32>
    %26 = vector.extract_strided_slice %25 {offsets = [0, 0], sizes = [16, 128], strides = [1, 1]} : vector<16x256xf32> to vector<16x128xf32>
    %27 = vector.extract_strided_slice %25 {offsets = [0, 128], sizes = [16, 128], strides = [1, 1]} : vector<16x256xf32> to vector<16x128xf32>
    %28 = arith.mulf %26, %26 : vector<16x128xf32>
    %29 = arith.mulf %27, %27 : vector<16x128xf32>
    %30 = arith.addf %28, %29 : vector<16x128xf32>
    %31 = arith.truncf %30 : vector<16x128xf32> to vector<16x128xbf16>
    %32 = arith.extf %31 : vector<16x128xbf16> to vector<16x128xf32>
    %33 = arith.subf %30, %32 : vector<16x128xf32>
    %34 = arith.truncf %33 : vector<16x128xf32> to vector<16x128xbf16>
    %c0_12 = arith.constant 0 : index
    %c0_13 = arith.constant 0 : index
    %35 = vector.load %arg4[%c0_12, %c0_13] : memref<128x128xbf16, #tpu.memory_space<vmem>>, vector<128x128xbf16>
    %cst_14 = arith.constant dense<0.000000e+00> : vector<16x128xf32>
    %36 = tpu.matmul %31, %35, %cst_14 {dimension_numbers = #tpu.dot_dimension_numbers<[1], [0], [0], [1], [0, 0, 1, 1], [], []>} : vector<16x128xbf16>, vector<128x128xbf16>, vector<16x128xf32> -> vector<16x128xf32>
    %c0_15 = arith.constant 0 : index
    %c0_16 = arith.constant 0 : index
    %37 = vector.load %arg4[%c0_15, %c0_16] : memref<128x128xbf16, #tpu.memory_space<vmem>>, vector<128x128xbf16>
    %cst_17 = arith.constant dense<0.000000e+00> : vector<16x128xf32>
    %38 = tpu.matmul %34, %37, %cst_17 {dimension_numbers = #tpu.dot_dimension_numbers<[1], [0], [0], [1], [0, 0, 1, 1], [], []>} : vector<16x128xbf16>, vector<128x128xbf16>, vector<16x128xf32> -> vector<16x128xf32>
    %39 = arith.addf %36, %38 : vector<16x128xf32>
    %c0_18 = arith.constant 0 : index
    %c0_19 = arith.constant 0 : index
    %40 = vector.load %arg5[%c0_18, %c0_19] : memref<128x128xbf16, #tpu.memory_space<vmem>>, vector<128x128xbf16>
    %cst_20 = arith.constant dense<0.000000e+00> : vector<16x128xf32>
    %41 = tpu.matmul %31, %40, %cst_20 {dimension_numbers = #tpu.dot_dimension_numbers<[1], [0], [0], [1], [0, 0, 1, 1], [], []>} : vector<16x128xbf16>, vector<128x128xbf16>, vector<16x128xf32> -> vector<16x128xf32>
    %42 = arith.addf %39, %41 : vector<16x128xf32>
    %cst_21 = arith.constant 1.000000e-10 : f32
    %43 = vector.broadcast %cst_21 : f32 to vector<16x128xf32>
    %44 = arith.addf %42, %43 : vector<16x128xf32>
    %45 = math.log %44 : vector<16x128xf32>
    %46 = tpu.iota {dimensions = array<i32: 1>} : vector<16x128xi32>
    %c0_i32 = arith.constant 0 : i32
    %47 = vector.broadcast %c0_i32 : i32 to vector<16x128xi32>
    %48 = arith.cmpi eq, %46, %47 : vector<16x128xi32>
    %49 = vector.shape_cast %9 : vector<16x1xf32> to vector<16x1xf32>
    %50 = vector.broadcast %49 : vector<16x1xf32> to vector<16x128xf32>
    %51 = arith.select %48, %50, %45 : vector<16x128xi1>, vector<16x128xf32>
    %c0_22 = arith.constant 0 : index
    %c0_23 = arith.constant 0 : index
    %52 = vector.load %arg6[%c0_22, %c0_23] : memref<16x128xf32, #tpu.memory_space<vmem>>, vector<16x128xf32>
    tpu.vector_store %arg6[%c0_22, %c0_23], %51 {strides = array<i32>} : memref<16x128xf32, #tpu.memory_space<vmem>>, vector<16x128xf32>,
    return
  }
  func.func @transform_0(%arg0: i32) -> (i32, i32) {
    %c0_i32 = arith.constant 0 : i32
    %c0_i32_0 = arith.constant 0 : i32
    return %arg0, %c0_i32 : i32, i32
  }
  func.func @transform_1(%arg0: i32) -> (i32, i32) {
    %c0_i32 = arith.constant 0 : i32
    %c0_i32_0 = arith.constant 0 : i32
    %c0_i32_1 = arith.constant 0 : i32
    return %c0_i32, %c0_i32_0 : i32, i32
  }
  func.func @transform_2(%arg0: i32) -> (i32, i32) {
    %c0_i32 = arith.constant 0 : i32
    %c0_i32_0 = arith.constant 0 : i32
    %c0_i32_1 = arith.constant 0 : i32
    return %c0_i32, %c0_i32_0 : i32, i32
  }
  func.func @transform_3(%arg0: i32) -> (i32, i32) {
    %c0_i32 = arith.constant 0 : i32
    %c0_i32_0 = arith.constant 0 : i32
    %c0_i32_1 = arith.constant 0 : i32
    return %c0_i32, %c0_i32_0 : i32, i32
  }
  func.func @transform_4(%arg0: i32) -> (i32, i32) {
    %c0_i32 = arith.constant 0 : i32
    %c0_i32_0 = arith.constant 0 : i32
    %c0_i32_1 = arith.constant 0 : i32
    return %c0_i32, %c0_i32_0 : i32, i32
  }
  func.func @transform_5(%arg0: i32) -> (i32, i32) {
    %c0_i32 = arith.constant 0 : i32
    %c0_i32_0 = arith.constant 0 : i32
    return %arg0, %c0_i32 : i32, i32
  }
}

</mosaic_0001>

<llo_original>
// kernel: tpu_custom_call.1
$region0: #{tpu_custom_call.1}
  #allocation0 [shape = 'u32[]', space=smem, size = 0x4, offset = 0x4, fixed_abs, tag = 'smem constant byte address 0x4 - core index']
  #allocation1 [shape = 'u32[144,128]{1,0:T(1,128)}', space=vmem, size = 0x12000, scoped, tag = 'internal scratch']
  %s0 = inlined_call_operand.hbm [shape: f32[32,256], index: 0, kind: input, shape index: {}]
  %s1 = inlined_call_operand.hbm [shape: bf16[256,256], index: 1, kind: input, shape index: {}]
  %s2 = inlined_call_operand.hbm [shape: bf16[256,256], index: 2, kind: input, shape index: {}]
  %s3 = inlined_call_operand.hbm [shape: bf16[128,128], index: 3, kind: input, shape index: {}]
  %s4 = inlined_call_operand.hbm [shape: bf16[128,128], index: 4, kind: input, shape index: {}]
  %s5 = inlined_call_operand.hbm [shape: f32[32,128], index: 5, kind: output, shape index: {}]
  %s6 = sld [smem:[#allocation0]]
  $region73: #{tpu_custom_call.1} parent=0
    _
  %s8 = ssub.s32 1, %s6
  %s9 = scalar_select 0, %s8, %s6
  $region1: #{tpu_custom_call.1} parent=0
    #allocation2 [shape = 'u8[32768]{0}', space=vmem, size = 0x8000, scoped, tag = 'input window, operand 0']
    #allocation3 [shape = 's32[2]{0}', space=sflag, size = 0x8, scoped, tag = 'scoped memory for tpu_custom_call.1']
    #allocation4 [shape = 's32[2]{0}', space=sflag, size = 0x8, scoped, tag = 'scoped memory for tpu_custom_call.1']
    #allocation5 [shape = 'u8[131072]{0}', space=vmem, size = 0x20000, scoped, tag = 'input window, operand 1, single buffered']
    #allocation6 [shape = 's32[1]{0}', space=sflag, size = 0x4, scoped, tag = 'scoped memory for tpu_custom_call.1']
    #allocation7 [shape = 'u8[131072]{0}', space=vmem, size = 0x20000, scoped, tag = 'input window, operand 2, single buffered']
    #allocation8 [shape = 'u8[32768]{0}', space=vmem, size = 0x8000, scoped, tag = 'input window, operand 3, single buffered']
    #allocation9 [shape = 's32[1]{0}', space=sflag, size = 0x4, scoped, tag = 'scoped memory for tpu_custom_call.1']
    #allocation10 [shape = 'u8[32768]{0}', space=vmem, size = 0x8000, scoped, tag = 'input window, operand 4, single buffered']
    #allocation11 [shape = 'u8[16384]{0}', space=vmem, size = 0x4000, scoped, tag = 'output window, operand 0']
    %10 = vsyncpa [#allocation3], 0
    %s11 = scalar_lea.sflag [#allocation3], 1
    %12 = vsyncpa %s11, 0
    %13 = vsyncpa [#allocation6], 0
    %14 = vsyncpa [#allocation9], 0
    %15 = vsyncpa [#allocation4], 0
    %s16 = scalar_lea.sflag [#allocation4], 1
    %17 = vsyncpa %s16, 0
    loop: start=0, step=1, limit=4
    $region2: #{tpu_custom_call.1} parent=1 // loop_pre_header
      _
    $region3: #{tpu_custom_call.1} parent=1 // loop_header
      %s19 = sphi 0, %s23
      %p20 = scmp.ge.s32.totalorder %s19, 4
      %s29 = sphi 0, %s31
      %s32 = sphi 0, %s29
      %s33 = sphi 0, %s32
      %s49 = sphi 0, %s33
      %s53 = sphi 0, %s53
      %s55 = sphi 0, %s53
      %s56 = sphi 0, %s55
      %s70 = sphi 0, %s56
      %s74 = sphi 0, %s74
      %s76 = sphi 0, %s74
      %s77 = sphi 0, %s76
      %s91 = sphi 0, %s77
      %s95 = sphi 0, %s95
      %s97 = sphi 0, %s95
      %s98 = sphi 0, %s97
      %s112 = sphi 0, %s98
      %s116 = sphi 0, %s116
      %s118 = sphi 0, %s116
      %s119 = sphi 0, %s118
      %s133 = sphi 0, %s119
      %s139 = sphi 0, %s141
      %s142 = sphi 0, %s139
      %s143 = sphi 0, %s142
      %s159 = sphi 0, %s143
    $region4: #{tpu_custom_call.1} parent=1 // loop_header_branch
      %22 = sbr.rel (%p20) target = $region8
    $region5: #{tpu_custom_call.1} parent=1 // loop_body
      %s24 = ssub.s32 %s19, 1
      %s25 = ssub.s32 %s19, 2
      %s26 = sadd.s32 %s19, 1
      %s27 = ssub.s32 %s19, %s26
      %p28 = scmp.eq.s32.totalorder %s27, 0
      %s30 = sadd.s32 %s29, 1
      %s31 = scalar_select %p28, %s29, %s30
      %p34 = pneg %p28
      %p35 = scmp.eq.s32.totalorder %s19, 1
      %p36 = por %p34, %p35
      %p37 = scmp.ne.s32.totalorder %s29, %s32
      %p38 = scmp.eq.s32.totalorder %s19, 0
      %p39 = por %p37, %p38
      %p40 = scmp.ne.s32.totalorder %s29, %s32
      %p41 = scmp.eq.s32.totalorder %s24, 1
      %p42 = por %p40, %p41
      %p43 = scmp.ne.s32.totalorder %s32, %s33
      %p44 = scmp.eq.s32.totalorder %s24, 0
      %p45 = por %p43, %p44
      %p46 = scmp.ne.s32.totalorder %s32, %s33
      %p47 = scmp.eq.s32.totalorder %s25, 1
      %p48 = por %p46, %p47
      %p50 = scmp.ne.s32.totalorder %s33, %s49
      %p51 = scmp.eq.s32.totalorder %s25, 0
      %p52 = por %p50, %p51
      %s54 = sadd.s32 %s53, 1
      %p57 = scmp.eq.s32.totalorder %s19, 1
      %p58 = scmp.ne.s32.totalorder %s53, %s55
      %p59 = scmp.eq.s32.totalorder %s19, 0
      %p60 = por %p58, %p59
      %p61 = scmp.ne.s32.totalorder %s53, %s55
      %p62 = scmp.eq.s32.totalorder %s24, 1
      %p63 = por %p61, %p62
      %p64 = scmp.ne.s32.totalorder %s55, %s56
      %p65 = scmp.eq.s32.totalorder %s24, 0
      %p66 = por %p64, %p65
      %p67 = scmp.ne.s32.totalorder %s55, %s56
      %p68 = scmp.eq.s32.totalorder %s25, 1
      %p69 = por %p67, %p68
      %p71 = scmp.ne.s32.totalorder %s56, %s70
      %p72 = scmp.eq.s32.totalorder %s25, 0
      %p73 = por %p71, %p72
      %s75 = sadd.s32 %s74, 1
      %p78 = scmp.eq.s32.totalorder %s19, 1
      %p79 = scmp.ne.s32.totalorder %s74, %s76
      %p80 = scmp.eq.s32.totalorder %s19, 0
      %p81 = por %p79, %p80
      %p82 = scmp.ne.s32.totalorder %s74, %s76
      %p83 = scmp.eq.s32.totalorder %s24, 1
      %p84 = por %p82, %p83
      %p85 = scmp.ne.s32.totalorder %s76, %s77
      %p86 = scmp.eq.s32.totalorder %s24, 0
      %p87 = por %p85, %p86
      %p88 = scmp.ne.s32.totalorder %s76, %s77
      %p89 = scmp.eq.s32.totalorder %s25, 1
      %p90 = por %p88, %p89
      %p92 = scmp.ne.s32.totalorder %s77, %s91
      %p93 = scmp.eq.s32.totalorder %s25, 0
      %p94 = por %p92, %p93
      %s96 = sadd.s32 %s95, 1
      %p99 = scmp.eq.s32.totalorder %s19, 1
      %p100 = scmp.ne.s32.totalorder %s95, %s97
      %p101 = scmp.eq.s32.totalorder %s19, 0
      %p102 = por %p100, %p101
      %p103 = scmp.ne.s32.totalorder %s95, %s97
      %p104 = scmp.eq.s32.totalorder %s24, 1
      %p105 = por %p103, %p104
      %p106 = scmp.ne.s32.totalorder %s97, %s98
      %p107 = scmp.eq.s32.totalorder %s24, 0
      %p108 = por %p106, %p107
      %p109 = scmp.ne.s32.totalorder %s97, %s98
      %p110 = scmp.eq.s32.totalorder %s25, 1
      %p111 = por %p109, %p110
      %p113 = scmp.ne.s32.totalorder %s98, %s112
      %p114 = scmp.eq.s32.totalorder %s25, 0
      %p115 = por %p113, %p114
      %s117 = sadd.s32 %s116, 1
      %p120 = scmp.eq.s32.totalorder %s19, 1
      %p121 = scmp.ne.s32.totalorder %s116, %s118
      %p122 = scmp.eq.s32.totalorder %s19, 0
      %p123 = por %p121, %p122
      %p124 = scmp.ne.s32.totalorder %s116, %s118
      %p125 = scmp.eq.s32.totalorder %s24, 1
      %p126 = por %p124, %p125
      %p127 = scmp.ne.s32.totalorder %s118, %s119
      %p128 = scmp.eq.s32.totalorder %s24, 0
      %p129 = por %p127, %p128
      %p130 = scmp.ne.s32.totalorder %s118, %s119
      %p131 = scmp.eq.s32.totalorder %s25, 1
      %p132 = por %p130, %p131
      %p134 = scmp.ne.s32.totalorder %s119, %s133
      %p135 = scmp.eq.s32.totalorder %s25, 0
      %p136 = por %p134, %p135
      %s137 = ssub.s32 %s19, %s26
      %p138 = scmp.eq.s32.totalorder %s137, 0
      %s140 = sadd.s32 %s139, 1
      %s141 = scalar_select %p138, %s139, %s140
      %p144 = pneg %p138
      %p145 = scmp.eq.s32.totalorder %s19, 1
      %p146 = por %p144, %p145
      %p147 = scmp.ne.s32.totalorder %s139, %s142
      %p148 = scmp.eq.s32.totalorder %s19, 0
      %p149 = por %p147, %p148
      %p150 = scmp.ne.s32.totalorder %s139, %s142
      %p151 = scmp.eq.s32.totalorder %s24, 1
      %p152 = por %p150, %p151
      %p153 = scmp.ne.s32.totalorder %s142, %s143
      %p154 = scmp.eq.s32.totalorder %s24, 0
      %p155 = por %p153, %p154
      %p156 = scmp.ne.s32.totalorder %s142, %s143
      %p157 = scmp.eq.s32.totalorder %s25, 1
      %p158 = por %p156, %p157
      %p160 = scmp.ne.s32.totalorder %s143, %s159
      %p161 = scmp.eq.s32.totalorder %s25, 0
      %p162 = por %p160, %p161
      %p163 = scmp.le.s32.totalorder 1, %s19
      %p164 = scmp.lt.s32.totalorder %s19, 3
      %p165 = pnand %p163, %p164
      %p166 = pneg %p165
      // Predicated region
      $region9: #{tpu_custom_call.1} parent=5 // pred_check
        _
      $region10: #{tpu_custom_call.1} parent=5 // pred_check_branch
        %168 = sbr.rel (%p165) target = $region12
      $region11: #{tpu_custom_call.1} parent=5 // pred_region
        %s169 = ssub.s32 %s19, 1
        // Predicated region
        $region13: #{tpu_custom_call.1} parent=11 // pred_check
          %p170 = pneg %p66
        $region14: #{tpu_custom_call.1} parent=11 // pred_check_branch
          %172 = sbr.rel (%p170) target = $region16
        $region15: #{tpu_custom_call.1} parent=11 // pred_region
          %s174 = ssub.s32 4096, 4096
          %175 = vsyncadd [#allocation6], %s174
          %s176 = sshll.u32 [#allocation5], 4
          %s177 = int_to_ptr.vmem [resolvable:$true] %s176
          %182 = dma.hbm_to_vmem [thread:$0]  %s1, 4096, %s177, [#allocation6], 128, 128, 8
        $region16: #{tpu_custom_call.1} parent=11 // pred_fallthru
          _
        // Predicated region
        $region17: #{tpu_custom_call.1} parent=11 // pred_check
          %p183 = pneg %p87
        $region18: #{tpu_custom_call.1} parent=11 // pred_check_branch
          %185 = sbr.rel (%p183) target = $region20
        $region19: #{tpu_custom_call.1} parent=11 // pred_region
          %s187 = ssub.s32 4096, 4096
          %188 = vsyncadd [#allocation6], %s187
          %s189 = sshll.u32 [#allocation7], 4
          %s190 = int_to_ptr.vmem [resolvable:$true] %s189
          %195 = dma.hbm_to_vmem [thread:$0]  %s2, 4096, %s190, [#allocation6], 128, 128, 8
        $region20: #{tpu_custom_call.1} parent=11 // pred_fallthru
          _
        // Predicated region
        $region21: #{tpu_custom_call.1} parent=11 // pred_check
          %p196 = pneg %p108
        $region22: #{tpu_custom_call.1} parent=11 // pred_check_branch
          %198 = sbr.rel (%p196) target = $region24
        $region23: #{tpu_custom_call.1} parent=11 // pred_region
          %s200 = ssub.s32 1024, 1024
          %201 = vsyncadd [#allocation9], %s200
          %s202 = sshll.u32 [#allocation8], 4
          %s203 = int_to_ptr.vmem [resolvable:$true] %s202
          %208 = dma.hbm_to_vmem [thread:$0]  %s3, 1024, %s203, [#allocation9], 64, 64, 4
        $region24: #{tpu_custom_call.1} parent=11 // pred_fallthru
          _
        // Predicated region
        $region25: #{tpu_custom_call.1} parent=11 // pred_check
          %p209 = pneg %p129
        $region26: #{tpu_custom_call.1} parent=11 // pred_check_branch
          %211 = sbr.rel (%p209) target = $region28
        $region27: #{tpu_custom_call.1} parent=11 // pred_region
          %s213 = ssub.s32 1024, 1024
          %214 = vsyncadd [#allocation9], %s213
          %s215 = sshll.u32 [#allocation10], 4
          %s216 = int_to_ptr.vmem [resolvable:$true] %s215
          %221 = dma.hbm_to_vmem [thread:$0]  %s4, 1024, %s216, [#allocation9], 64, 64, 4
        $region28: #{tpu_custom_call.1} parent=11 // pred_fallthru
          _
      $region12: #{tpu_custom_call.1} parent=5 // pred_fallthru
        _
      %p222 = scmp.lt.s32.totalorder %s19, 2
      // Predicated region
      $region29: #{tpu_custom_call.1} parent=5 // pred_check
        %p223 = pneg %p222
      $region30: #{tpu_custom_call.1} parent=5 // pred_check_branch
        %225 = sbr.rel (%p223) target = $region32
      $region31: #{tpu_custom_call.1} parent=5 // pred_region
        // Predicated region
        $region33: #{tpu_custom_call.1} parent=31 // pred_check
          %p226 = pneg %p39
        $region34: #{tpu_custom_call.1} parent=31 // pred_check_branch
          %228 = sbr.rel (%p226) target = $region36
        $region35: #{tpu_custom_call.1} parent=31 // pred_region
          %s229 = sand.u32 %s29, 1
          %s230 = scalar_lea.sflag [#allocation3], %s229
          %s231 = sand.u32 %s29, 1
          %s232 = smul.addr %s231, 32
          %s233 = scalar_lea.vmem [#allocation2], %s232
          %s234 = smul.u32 2, %s19
          %s236 = ssub.s32 512, 512
          %237 = vsyncadd %s230, %s236
          %s238 = smul.addr %s234, 2
          %s239 = smul.addr %s238, 128
          %s240 = scalar_lea.hbm %s0, %s239
          %s241 = sshll.u32 %s233, 4
          %s242 = int_to_ptr.vmem [resolvable:$true] %s241
          %247 = dma.hbm_to_vmem [thread:$0]  %s240, 512, %s242, %s230, 256, 256, 16
        $region36: #{tpu_custom_call.1} parent=31 // pred_fallthru
          _
      $region32: #{tpu_custom_call.1} parent=5 // pred_fallthru
        _
      %p248 = scmp.le.s32.totalorder 1, %s19
      %p249 = scmp.lt.s32.totalorder %s19, 3
      %p250 = pnand %p248, %p249
      %p251 = pneg %p250
      // Predicated region
      $region37: #{tpu_custom_call.1} parent=5 // pred_check
        _
      $region38: #{tpu_custom_call.1} parent=5 // pred_check_branch
        %253 = sbr.rel (%p250) target = $region40
      $region39: #{tpu_custom_call.1} parent=5 // pred_region
        %s254 = ssub.s32 %s19, 1
        %s255 = sand.u32 %s32, 1
        %s256 = scalar_lea.sflag [#allocation3], %s255
        %s257 = sand.u32 %s32, 1
        %s258 = smul.addr %s257, 32
        %s259 = scalar_lea.vmem [#allocation2], %s258
        // Predicated region
        $region41: #{tpu_custom_call.1} parent=39 // pred_check
          %p260 = pneg %p45
        $region42: #{tpu_custom_call.1} parent=39 // pred_check_branch
          %262 = sbr.rel (%p260) target = $region44
        $region43: #{tpu_custom_call.1} parent=39 // pred_region
          %263 = dma.done %s256, 512
        $region44: #{tpu_custom_call.1} parent=39 // pred_fallthru
          _
        // Predicated region
        $region45: #{tpu_custom_call.1} parent=39 // pred_check
          %p264 = pneg %p66
        $region46: #{tpu_custom_call.1} parent=39 // pred_check_branch
          %266 = sbr.rel (%p264) target = $region48
        $region47: #{tpu_custom_call.1} parent=39 // pred_region
          %267 = dma.done [#allocation6], 4096
        $region48: #{tpu_custom_call.1} parent=39 // pred_fallthru
          _
        // Predicated region
        $region49: #{tpu_custom_call.1} parent=39 // pred_check
          %p268 = pneg %p87
        $region50: #{tpu_custom_call.1} parent=39 // pred_check_branch
          %270 = sbr.rel (%p268) target = $region52
        $region51: #{tpu_custom_call.1} parent=39 // pred_region
          %271 = dma.done [#allocation6], 4096
        $region52: #{tpu_custom_call.1} parent=39 // pred_fallthru
          _
        // Predicated region
        $region53: #{tpu_custom_call.1} parent=39 // pred_check
          %p272 = pneg %p108
        $region54: #{tpu_custom_call.1} parent=39 // pred_check_branch
          %274 = sbr.rel (%p272) target = $region56
        $region55: #{tpu_custom_call.1} parent=39 // pred_region
          %275 = dma.done [#allocation9], 1024
        $region56: #{tpu_custom_call.1} parent=39 // pred_fallthru
          _
        // Predicated region
        $region57: #{tpu_custom_call.1} parent=39 // pred_check
          %p276 = pneg %p129
        $region58: #{tpu_custom_call.1} parent=39 // pred_check_branch
          %278 = sbr.rel (%p276) target = $region60
        $region59: #{tpu_custom_call.1} parent=39 // pred_region
          %279 = dma.done [#allocation9], 1024
        $region60: #{tpu_custom_call.1} parent=39 // pred_fallthru
          _
        %s280 = sand.u32 %s32, 1
        %s281 = scalar_lea.sflag [#allocation3], %s280
        %s282 = sand.u32 %s32, 1
        %s283 = smul.addr %s282, 32
        %s284 = scalar_lea.vmem [#allocation2], %s283
        %p285 = pneg %p45
        %p286 = pneg %p42
        %p287 = pneg %p66
        %p288 = pneg %p63
        %p289 = pneg %p87
        %p290 = pneg %p84
        %p291 = pneg %p108
        %p292 = pneg %p105
        %p293 = pneg %p129
        %p294 = pneg %p126
        %p295 = pneg %p155
        %p296 = pneg %p152
        %s297 = sand.u32 %s142, 1
        %s298 = scalar_lea.sflag [#allocation4], %s297
        %s299 = sand.u32 %s142, 1
        %s300 = smul.addr %s299, 16
        %s301 = scalar_lea.vmem [#allocation11], %s300
        %s302 = smul.u32 2, %s24
        %s303 = smul.u32 2, %s24
        %v305 = vld [vmem:[%s259] sm:$0xff]
        %v306 = vld [vmem:[%s259 + $0x8] sm:$0xff]
        %v307 = vld [vmem:[%s259 + $0x10] sm:$0xff]
        %v308 = vld [vmem:[%s259 + $0x18] sm:$0xff]
        %v309 = vmul.f32 %v305, %v305
        %v310 = vmul.f32 %v306, %v306
        %v311 = vmul.f32 %v307, %v307
        %v312 = vmul.f32 %v308, %v308
        %v313 = vadd.f32 %v309, %v310
        %314 = vadd.xlane.f32.xlu0 %v313
        %v315 = vpop.xlane.xlu0 %314
        %v316 = vadd.f32 %v311, %v312
        %317 = vadd.xlane.f32.xlu0 %v316
        %v318 = vpop.xlane.xlu0 %317
        %v319 = vsub.f32 %v315, %v310
        %v320 = vsub.f32 %v318, %v312
        %v321 = vadd.f32 %v319, 1e-15
        %v322 = vadd.f32 %v320, 1e-15
        %v323 = vlog2.pop %v321
        %v324 = vmul.f32 %v323, 0.6931472
        %v325 = vlog2.pop %v322
        %v326 = vmul.f32 %v325, 0.6931472
        %327 = vrot.lane.b32.xlu0 %v305, 1
        %v328 = vpop.permute.xlu0 %327
        %329 = vrot.lane.b32.xlu0 %v307, 1
        %v330 = vpop.permute.xlu0 %329
        %331 = vrot.lane.b32.xlu0 %v306, 1
        %v332 = vpop.permute.xlu0 %331
        %333 = vrot.lane.b32.xlu0 %v308, 1
        %v334 = vpop.permute.xlu0 %333
        %v335 = vlaneseq
        %v336 = vand.u32 %v335, 127
        %vm337 = vcmp.lt.s32.totalorder %v336, 1
        %v338 = vsel %vm337, %v328, %v332
        %v339 = vsel %vm337, %v330, %v334
        %v340 = vsel %vm337, %v332, %v328
        %v341 = vsel %vm337, %v334, %v330
        %v342 = vmul.f32 %v340, 0.97
        %v343 = vmul.f32 %v338, 0.97
        %v344 = vmul.f32 %v341, 0.97
        %v345 = vmul.f32 %v339, 0.97
        %v346 = vsub.f32 %v305, %v342
        %v347 = vsub.f32 %v306, %v343
        %v348 = vsub.f32 %v307, %v344
        %v349 = vsub.f32 %v308, %v345
        %v350 = vpack.c.bf16 %v348, %v346
        %v351 = vpack.c.bf16 %v349, %v347
        %v352 = vunpack.c.l.bf16 %v350
        %v353 = vunpack.c.l.bf16 %v351
        %v354 = vunpack.c.h.bf16 %v350
        %v355 = vunpack.c.h.bf16 %v351
        %v356 = vsub.f32 %v346, %v352
        %v357 = vsub.f32 %v347, %v353
        %v358 = vsub.f32 %v348, %v354
        %v359 = vsub.f32 %v349, %v355
        %v360 = vpack.c.bf16 %v358, %v356
        %v361 = vpack.c.bf16 %v359, %v357
        %v362 = vld [vmem:[#allocation5] sm:$0xff]
        %v363 = vld [vmem:[#allocation5 + $0x8] sm:$0xff]
        %v364 = vld [vmem:[#allocation5 + $0x10] sm:$0xff]
        %v365 = vld [vmem:[#allocation5 + $0x18] sm:$0xff]
        %v366 = vld [vmem:[#allocation5 + $0x20] sm:$0xff]
        %v367 = vld [vmem:[#allocation5 + $0x28] sm:$0xff]
        %v368 = vld [vmem:[#allocation5 + $0x30] sm:$0xff]
        %v369 = vld [vmem:[#allocation5 + $0x38] sm:$0xff]
        %v370 = vld [vmem:[#allocation5 + $0x40] sm:$0xff]
        %v371 = vld [vmem:[#allocation5 + $0x48] sm:$0xff]
        %v372 = vld [vmem:[#allocation5 + $0x50] sm:$0xff]
        %v373 = vld [vmem:[#allocation5 + $0x58] sm:$0xff]
        %v374 = vld [vmem:[#allocation5 + $0x60] sm:$0xff]
        %v375 = vld [vmem:[#allocation5 + $0x68] sm:$0xff]
        %v376 = vld [vmem:[#allocation5 + $0x70] sm:$0xff]
        %v377 = vld [vmem:[#allocation5 + $0x78] sm:$0xff]
        %v378 = vld [vmem:[#allocation5 + $0x80] sm:$0xff]
        %v379 = vld [vmem:[#allocation5 + $0x88] sm:$0xff]
        %v380 = vld [vmem:[#allocation5 + $0x90] sm:$0xff]
        %v381 = vld [vmem:[#allocation5 + $0x98] sm:$0xff]
        %v382 = vld [vmem:[#allocation5 + $0xa0] sm:$0xff]
        %v383 = vld [vmem:[#allocation5 + $0xa8] sm:$0xff]
        %v384 = vld [vmem:[#allocation5 + $0xb0] sm:$0xff]
        %v385 = vld [vmem:[#allocation5 + $0xb8] sm:$0xff]
        %v386 = vld [vmem:[#allocation5 + $0xc0] sm:$0xff]
        %v387 = vld [vmem:[#allocation5 + $0xc8] sm:$0xff]
        %v388 = vld [vmem:[#allocation5 + $0xd0] sm:$0xff]
        %v389 = vld [vmem:[#allocation5 + $0xd8] sm:$0xff]
        %v390 = vld [vmem:[#allocation5 + $0xe0] sm:$0xff]
        %v391 = vld [vmem:[#allocation5 + $0xe8] sm:$0xff]
        %v392 = vld [vmem:[#allocation5 + $0xf0] sm:$0xff]
        %v393 = vld [vmem:[#allocation5 + $0xf8] sm:$0xff]
        %v426 = vunpack.c.l.b16 %v362
        %v427 = vunpack.c.h.b16 %v362
        %v428 = vunpack.c.l.b16 %v363
        %v429 = vunpack.c.h.b16 %v363
        %v430 = vunpack.c.l.b16 %v364
        %v431 = vunpack.c.h.b16 %v364
        %v432 = vunpack.c.l.b16 %v365
        %v433 = vunpack.c.h.b16 %v365
        %v434 = vunpack.c.l.b16 %v366
        %v435 = vunpack.c.h.b16 %v366
        %v436 = vunpack.c.l.b16 %v367
        %v437 = vunpack.c.h.b16 %v367
        %v438 = vunpack.c.l.b16 %v368
        %v439 = vunpack.c.h.b16 %v368
        %v440 = vunpack.c.l.b16 %v369
        %v441 = vunpack.c.h.b16 %v369
        %v442 = vunpack.c.l.b16 %v370
        %v443 = vunpack.c.h.b16 %v370
        %v444 = vunpack.c.l.b16 %v371
        %v445 = vunpack.c.h.b16 %v371
        %v446 = vunpack.c.l.b16 %v372
        %v447 = vunpack.c.h.b16 %v372
        %v448 = vunpack.c.l.b16 %v373
        %v449 = vunpack.c.h.b16 %v373
        %v450 = vunpack.c.l.b16 %v374
        %v451 = vunpack.c.h.b16 %v374
        %v452 = vunpack.c.l.b16 %v375
        %v453 = vunpack.c.h.b16 %v375
        %v454 = vunpack.c.l.b16 %v376
        %v455 = vunpack.c.h.b16 %v376
        %v456 = vunpack.c.l.b16 %v377
        %v457 = vunpack.c.h.b16 %v377
        %v458 = vunpack.c.l.b16 %v378
        %v459 = vunpack.c.h.b16 %v378
        %v460 = vunpack.c.l.b16 %v379
        %v461 = vunpack.c.h.b16 %v379
        %v462 = vunpack.c.l.b16 %v380
        %v463 = vunpack.c.h.b16 %v380
        %v464 = vunpack.c.l.b16 %v381
        %v465 = vunpack.c.h.b16 %v381
        %v466 = vunpack.c.l.b16 %v382
        %v467 = vunpack.c.h.b16 %v382
        %v468 = vunpack.c.l.b16 %v383
        %v469 = vunpack.c.h.b16 %v383
        %v470 = vunpack.c.l.b16 %v384
        %v471 = vunpack.c.h.b16 %v384
        %v472 = vunpack.c.l.b16 %v385
        %v473 = vunpack.c.h.b16 %v385
        %v474 = vunpack.c.l.b16 %v386
        %v475 = vunpack.c.h.b16 %v386
        %v476 = vunpack.c.l.b16 %v387
        %v477 = vunpack.c.h.b16 %v387
        %v478 = vunpack.c.l.b16 %v388
        %v479 = vunpack.c.h.b16 %v388
        %v480 = vunpack.c.l.b16 %v389
        %v481 = vunpack.c.h.b16 %v389
        %v482 = vunpack.c.l.b16 %v390
        %v483 = vunpack.c.h.b16 %v390
        %v484 = vunpack.c.l.b16 %v391
        %v485 = vunpack.c.h.b16 %v391
        %v486 = vunpack.c.l.b16 %v392
        %v487 = vunpack.c.h.b16 %v392
        %v488 = vunpack.c.l.b16 %v393
        %v489 = vunpack.c.h.b16 %v393
        %v490 = vpack.c.b16 %v428, %v426
        %v491 = vpack.c.b16 %v429, %v427
        %v492 = vpack.c.b16 %v432, %v430
        %v493 = vpack.c.b16 %v433, %v431
        %v494 = vpack.c.b16 %v436, %v434
        %v495 = vpack.c.b16 %v437, %v435
        %v496 = vpack.c.b16 %v440, %v438
        %v497 = vpack.c.b16 %v441, %v439
        %v498 = vpack.c.b16 %v444, %v442
        %v499 = vpack.c.b16 %v445, %v443
        %v500 = vpack.c.b16 %v448, %v446
        %v501 = vpack.c.b16 %v449, %v447
        %v502 = vpack.c.b16 %v452, %v450
        %v503 = vpack.c.b16 %v453, %v451
        %v504 = vpack.c.b16 %v456, %v454
        %v505 = vpack.c.b16 %v457, %v455
        %v506 = vpack.c.b16 %v460, %v458
        %v507 = vpack.c.b16 %v461, %v459
        %v508 = vpack.c.b16 %v464, %v462
        %v509 = vpack.c.b16 %v465, %v463
        %v510 = vpack.c.b16 %v468, %v466
        %v511 = vpack.c.b16 %v469, %v467
        %v512 = vpack.c.b16 %v472, %v470
        %v513 = vpack.c.b16 %v473, %v471
        %v514 = vpack.c.b16 %v476, %v474
        %v515 = vpack.c.b16 %v477, %v475
        %v516 = vpack.c.b16 %v480, %v478
        %v517 = vpack.c.b16 %v481, %v479
        %v518 = vpack.c.b16 %v484, %v482
        %v519 = vpack.c.b16 %v485, %v483
        %v520 = vpack.c.b16 %v488, %v486
        %v521 = vpack.c.b16 %v489, %v487
        %554 = vmatprep.subr.bf16.mxu0 %v491
        %555 = vmatpush1.bf16.msra.mxu0 %v490
        %556 = vmatprep.subr.bf16.mxu0 %v493
        %557 = vmatpush1.bf16.msra.mxu0 %v492
        %558 = vmatprep.subr.bf16.mxu0 %v495
        %559 = vmatpush1.bf16.msra.mxu0 %v494
        %560 = vmatprep.subr.bf16.mxu0 %v497
        %561 = vmatpush1.bf16.msra.mxu0 %v496
        %562 = vmatprep.subr.bf16.mxu0 %v499
        %563 = vmatpush1.bf16.msra.mxu0 %v498
        %564 = vmatprep.subr.bf16.mxu0 %v501
        %565 = vmatpush1.bf16.msra.mxu0 %v500
        %566 = vmatprep.subr.bf16.mxu0 %v503
        %567 = vmatpush1.bf16.msra.mxu0 %v502
        %568 = vmatprep.subr.bf16.mxu0 %v505
        %569 = vmatpush1.bf16.msra.mxu0 %v504
        %570 = vmatprep.subr.bf16.mxu0 %v507
        %571 = vmatpush1.bf16.msra.mxu0 %v506
        %572 = vmatprep.subr.bf16.mxu0 %v509
        %573 = vmatpush1.bf16.msra.mxu0 %v508
        %574 = vmatprep.subr.bf16.mxu0 %v511
        %575 = vmatpush1.bf16.msra.mxu0 %v510
        %576 = vmatprep.subr.bf16.mxu0 %v513
        %577 = vmatpush1.bf16.msra.mxu0 %v512
        %578 = vmatprep.subr.bf16.mxu0 %v515
        %579 = vmatpush1.bf16.msra.mxu0 %v514
        %580 = vmatprep.subr.bf16.mxu0 %v517
        %581 = vmatpush1.bf16.msra.mxu0 %v516
        %582 = vmatprep.subr.bf16.mxu0 %v519
        %583 = vmatpush1.bf16.msra.mxu0 %v518
        %584 = vmatprep.subr.bf16.mxu0 %v521
        %585 = vmatpush1.bf16.msra.mxu0 %v520
        %586 = vmatprep.mubr.bf16.mxu0 %v361
        %587 = vmatmul.mubr.bf16.gmra.mrb[0].mxu0 %v360
        %v588 = vpop.f32.mrb[0].mxu0
        %v589 = vadd.f32 0.0, %v588
        %v590 = vpop.f32.mrb[0].mxu0
        %v591 = vadd.f32 0.0, %v590
        %v592 = vpop.f32.mrb[0].mxu0
        %v593 = vadd.f32 0.0, %v592
        %v594 = vpop.f32.mrb[0].mxu0
        %v595 = vadd.f32 0.0, %v594
        %596 = vdwg.mxu0
        %597 = vmatprep.subr.bf16.mxu0 %v491
        %598 = vmatpush1.bf16.msra.mxu0 %v490
        %599 = vmatprep.subr.bf16.mxu0 %v493
        %600 = vmatpush1.bf16.msra.mxu0 %v492
        %601 = vmatprep.subr.bf16.mxu0 %v495
        %602 = vmatpush1.bf16.msra.mxu0 %v494
        %603 = vmatprep.subr.bf16.mxu0 %v497
        %604 = vmatpush1.bf16.msra.mxu0 %v496
        %605 = vmatprep.subr.bf16.mxu0 %v499
        %606 = vmatpush1.bf16.msra.mxu0 %v498
        %607 = vmatprep.subr.bf16.mxu0 %v501
        %608 = vmatpush1.bf16.msra.mxu0 %v500
        %609 = vmatprep.subr.bf16.mxu0 %v503
        %610 = vmatpush1.bf16.msra.mxu0 %v502
        %611 = vmatprep.subr.bf16.mxu0 %v505
        %612 = vmatpush1.bf16.msra.mxu0 %v504
        %613 = vmatprep.subr.bf16.mxu0 %v507
        %614 = vmatpush1.bf16.msra.mxu0 %v506
        %615 = vmatprep.subr.bf16.mxu0 %v509
        %616 = vmatpush1.bf16.msra.mxu0 %v508
        %617 = vmatprep.subr.bf16.mxu0 %v511
        %618 = vmatpush1.bf16.msra.mxu0 %v510
        %619 = vmatprep.subr.bf16.mxu0 %v513
        %620 = vmatpush1.bf16.msra.mxu0 %v512
        %621 = vmatprep.subr.bf16.mxu0 %v515
        %622 = vmatpush1.bf16.msra.mxu0 %v514
        %623 = vmatprep.subr.bf16.mxu0 %v517
        %624 = vmatpush1.bf16.msra.mxu0 %v516
        %625 = vmatprep.subr.bf16.mxu0 %v519
        %626 = vmatpush1.bf16.msra.mxu0 %v518
        %627 = vmatprep.subr.bf16.mxu0 %v521
        %628 = vmatpush1.bf16.msra.mxu0 %v520
        %629 = vmatprep.mubr.bf16.mxu0 %v351
        %630 = vmatmul.mubr.bf16.gmra.mrb[0].mxu0 %v350
        %v631 = vpop.f32.mrb[0].mxu0
        %v632 = vadd.f32 %v589, %v631
        %v633 = vpop.f32.mrb[0].mxu0
        %v634 = vadd.f32 %v591, %v633
        %v635 = vpop.f32.mrb[0].mxu0
        %v636 = vadd.f32 %v593, %v635
        %v637 = vpop.f32.mrb[0].mxu0
        %v638 = vadd.f32 %v595, %v637
        %639 = vdwg.mxu0
        %v640 = vld [vmem:[#allocation7] sm:$0xff]
        %v641 = vld [vmem:[#allocation7 + $0x8] sm:$0xff]
        %v642 = vld [vmem:[#allocation7 + $0x10] sm:$0xff]
        %v643 = vld [vmem:[#allocation7 + $0x18] sm:$0xff]
        %v644 = vld [vmem:[#allocation7 + $0x20] sm:$0xff]
        %v645 = vld [vmem:[#allocation7 + $0x28] sm:$0xff]
        %v646 = vld [vmem:[#allocation7 + $0x30] sm:$0xff]
        %v647 = vld [vmem:[#allocation7 + $0x38] sm:$0xff]
        %v648 = vld [vmem:[#allocation7 + $0x40] sm:$0xff]
        %v649 = vld [vmem:[#allocation7 + $0x48] sm:$0xff]
        %v650 = vld [vmem:[#allocation7 + $0x50] sm:$0xff]
        %v651 = vld [vmem:[#allocation7 + $0x58] sm:$0xff]
        %v652 = vld [vmem:[#allocation7 + $0x60] sm:$0xff]
        %v653 = vld [vmem:[#allocation7 + $0x68] sm:$0xff]
        %v654 = vld [vmem:[#allocation7 + $0x70] sm:$0xff]
        %v655 = vld [vmem:[#allocation7 + $0x78] sm:$0xff]
        %v656 = vld [vmem:[#allocation7 + $0x80] sm:$0xff]
        %v657 = vld [vmem:[#allocation7 + $0x88] sm:$0xff]
        %v658 = vld [vmem:[#allocation7 + $0x90] sm:$0xff]
        %v659 = vld [vmem:[#allocation7 + $0x98] sm:$0xff]
        %v660 = vld [vmem:[#allocation7 + $0xa0] sm:$0xff]
        %v661 = vld [vmem:[#allocation7 + $0xa8] sm:$0xff]
        %v662 = vld [vmem:[#allocation7 + $0xb0] sm:$0xff]
        %v663 = vld [vmem:[#allocation7 + $0xb8] sm:$0xff]
        %v664 = vld [vmem:[#allocation7 + $0xc0] sm:$0xff]
        %v665 = vld [vmem:[#allocation7 + $0xc8] sm:$0xff]
        %v666 = vld [vmem:[#allocation7 + $0xd0] sm:$0xff]
        %v667 = vld [vmem:[#allocation7 + $0xd8] sm:$0xff]
        %v668 = vld [vmem:[#allocation7 + $0xe0] sm:$0xff]
        %v669 = vld [vmem:[#allocation7 + $0xe8] sm:$0xff]
        %v670 = vld [vmem:[#allocation7 + $0xf0] sm:$0xff]
        %v671 = vld [vmem:[#allocation7 + $0xf8] sm:$0xff]
        %v704 = vunpack.c.l.b16 %v640
        %v705 = vunpack.c.h.b16 %v640
        %v706 = vunpack.c.l.b16 %v641
        %v707 = vunpack.c.h.b16 %v641
        %v708 = vunpack.c.l.b16 %v642
        %v709 = vunpack.c.h.b16 %v642
        %v710 = vunpack.c.l.b16 %v643
        %v711 = vunpack.c.h.b16 %v643
        %v712 = vunpack.c.l.b16 %v644
        %v713 = vunpack.c.h.b16 %v644
        %v714 = vunpack.c.l.b16 %v645
        %v715 = vunpack.c.h.b16 %v645
        %v716 = vunpack.c.l.b16 %v646
        %v717 = vunpack.c.h.b16 %v646
        %v718 = vunpack.c.l.b16 %v647
        %v719 = vunpack.c.h.b16 %v647
        %v720 = vunpack.c.l.b16 %v648
        %v721 = vunpack.c.h.b16 %v648
        %v722 = vunpack.c.l.b16 %v649
        %v723 = vunpack.c.h.b16 %v649
        %v724 = vunpack.c.l.b16 %v650
        %v725 = vunpack.c.h.b16 %v650
        %v726 = vunpack.c.l.b16 %v651
        %v727 = vunpack.c.h.b16 %v651
        %v728 = vunpack.c.l.b16 %v652
        %v729 = vunpack.c.h.b16 %v652
        %v730 = vunpack.c.l.b16 %v653
        %v731 = vunpack.c.h.b16 %v653
        %v732 = vunpack.c.l.b16 %v654
        %v733 = vunpack.c.h.b16 %v654
        %v734 = vunpack.c.l.b16 %v655
        %v735 = vunpack.c.h.b16 %v655
        %v736 = vunpack.c.l.b16 %v656
        %v737 = vunpack.c.h.b16 %v656
        %v738 = vunpack.c.l.b16 %v657
        %v739 = vunpack.c.h.b16 %v657
        %v740 = vunpack.c.l.b16 %v658
        %v741 = vunpack.c.h.b16 %v658
        %v742 = vunpack.c.l.b16 %v659
        %v743 = vunpack.c.h.b16 %v659
        %v744 = vunpack.c.l.b16 %v660
        %v745 = vunpack.c.h.b16 %v660
        %v746 = vunpack.c.l.b16 %v661
        %v747 = vunpack.c.h.b16 %v661
        %v748 = vunpack.c.l.b16 %v662
        %v749 = vunpack.c.h.b16 %v662
        %v750 = vunpack.c.l.b16 %v663
        %v751 = vunpack.c.h.b16 %v663
        %v752 = vunpack.c.l.b16 %v664
        %v753 = vunpack.c.h.b16 %v664
        %v754 = vunpack.c.l.b16 %v665
        %v755 = vunpack.c.h.b16 %v665
        %v756 = vunpack.c.l.b16 %v666
        %v757 = vunpack.c.h.b16 %v666
        %v758 = vunpack.c.l.b16 %v667
        %v759 = vunpack.c.h.b16 %v667
        %v760 = vunpack.c.l.b16 %v668
        %v761 = vunpack.c.h.b16 %v668
        %v762 = vunpack.c.l.b16 %v669
        %v763 = vunpack.c.h.b16 %v669
        %v764 = vunpack.c.l.b16 %v670
        %v765 = vunpack.c.h.b16 %v670
        %v766 = vunpack.c.l.b16 %v671
        %v767 = vunpack.c.h.b16 %v671
        %v768 = vpack.c.b16 %v706, %v704
        %v769 = vpack.c.b16 %v707, %v705
        %v770 = vpack.c.b16 %v710, %v708
        %v771 = vpack.c.b16 %v711, %v709
        %v772 = vpack.c.b16 %v714, %v712
        %v773 = vpack.c.b16 %v715, %v713
        %v774 = vpack.c.b16 %v718, %v716
        %v775 = vpack.c.b16 %v719, %v717
        %v776 = vpack.c.b16 %v722, %v720
        %v777 = vpack.c.b16 %v723, %v721
        %v778 = vpack.c.b16 %v726, %v724
        %v779 = vpack.c.b16 %v727, %v725
        %v780 = vpack.c.b16 %v730, %v728
        %v781 = vpack.c.b16 %v731, %v729
        %v782 = vpack.c.b16 %v734, %v732
        %v783 = vpack.c.b16 %v735, %v733
        %v784 = vpack.c.b16 %v738, %v736
        %v785 = vpack.c.b16 %v739, %v737
        %v786 = vpack.c.b16 %v742, %v740
        %v787 = vpack.c.b16 %v743, %v741
        %v788 = vpack.c.b16 %v746, %v744
        %v789 = vpack.c.b16 %v747, %v745
        %v790 = vpack.c.b16 %v750, %v748
        %v791 = vpack.c.b16 %v751, %v749
        %v792 = vpack.c.b16 %v754, %v752
        %v793 = vpack.c.b16 %v755, %v753
        %v794 = vpack.c.b16 %v758, %v756
        %v795 = vpack.c.b16 %v759, %v757
        %v796 = vpack.c.b16 %v762, %v760
        %v797 = vpack.c.b16 %v763, %v761
        %v798 = vpack.c.b16 %v766, %v764
        %v799 = vpack.c.b16 %v767, %v765
        %832 = vmatprep.subr.bf16.mxu0 %v769
        %833 = vmatpush1.bf16.msra.mxu0 %v768
        %834 = vmatprep.subr.bf16.mxu0 %v771
        %835 = vmatpush1.bf16.msra.mxu0 %v770
        %836 = vmatprep.subr.bf16.mxu0 %v773
        %837 = vmatpush1.bf16.msra.mxu0 %v772
        %838 = vmatprep.subr.bf16.mxu0 %v775
        %839 = vmatpush1.bf16.msra.mxu0 %v774
        %840 = vmatprep.subr.bf16.mxu0 %v777
        %841 = vmatpush1.bf16.msra.mxu0 %v776
        %842 = vmatprep.subr.bf16.mxu0 %v779
        %843 = vmatpush1.bf16.msra.mxu0 %v778
        %844 = vmatprep.subr.bf16.mxu0 %v781
        %845 = vmatpush1.bf16.msra.mxu0 %v780
        %846 = vmatprep.subr.bf16.mxu0 %v783
        %847 = vmatpush1.bf16.msra.mxu0 %v782
        %848 = vmatprep.subr.bf16.mxu0 %v785
        %849 = vmatpush1.bf16.msra.mxu0 %v784
        %850 = vmatprep.subr.bf16.mxu0 %v787
        %851 = vmatpush1.bf16.msra.mxu0 %v786
        %852 = vmatprep.subr.bf16.mxu0 %v789
        %853 = vmatpush1.bf16.msra.mxu0 %v788
        %854 = vmatprep.subr.bf16.mxu0 %v791
        %855 = vmatpush1.bf16.msra.mxu0 %v790
        %856 = vmatprep.subr.bf16.mxu0 %v793
        %857 = vmatpush1.bf16.msra.mxu0 %v792
        %858 = vmatprep.subr.bf16.mxu0 %v795
        %859 = vmatpush1.bf16.msra.mxu0 %v794
        %860 = vmatprep.subr.bf16.mxu0 %v797
        %861 = vmatpush1.bf16.msra.mxu0 %v796
        %862 = vmatprep.subr.bf16.mxu0 %v799
        %863 = vmatpush1.bf16.msra.mxu0 %v798
        %864 = vmatprep.mubr.bf16.mxu0 %v351
        %865 = vmatmul.mubr.bf16.gmra.mrb[0].mxu0 %v350
        %v866 = vpop.f32.mrb[0].mxu0
        %v867 = vadd.f32 0.0, %v866
        %v868 = vpop.f32.mrb[0].mxu0
        %v869 = vadd.f32 0.0, %v868
        %v870 = vpop.f32.mrb[0].mxu0
        %v871 = vadd.f32 0.0, %v870
        %v872 = vpop.f32.mrb[0].mxu0
        %v873 = vadd.f32 0.0, %v872
        %874 = vdwg.mxu0
        %v875 = vadd.f32 %v632, %v867
        %v876 = vadd.f32 %v634, %v869
        %v877 = vadd.f32 %v636, %v871
        %v878 = vadd.f32 %v638, %v873
        %v879 = vmul.f32 %v875, %v875
        %v880 = vmul.f32 %v877, %v877
        %v881 = vmul.f32 %v876, %v876
        %v882 = vmul.f32 %v878, %v878
        %v883 = vadd.f32 %v879, %v881
        %v884 = vadd.f32 %v880, %v882
        %v885 = vpack.c.bf16 %v884, %v883
        %v886 = vunpack.c.l.bf16 %v885
        %v887 = vunpack.c.h.bf16 %v885
        %v888 = vsub.f32 %v883, %v886
        %v889 = vsub.f32 %v884, %v887
        %v890 = vpack.c.bf16 %v889, %v888
        %v891 = vld [vmem:[#allocation8] sm:$0xf]
        %v892 = vld [vmem:[#allocation8 + $0x4] sm:$0xf]
        %v893 = vld [vmem:[#allocation8 + $0x8] sm:$0xf]
        %v894 = vld [vmem:[#allocation8 + $0xc] sm:$0xf]
        %v895 = vld [vmem:[#allocation8 + $0x10] sm:$0xf]
        %v896 = vld [vmem:[#allocation8 + $0x14] sm:$0xf]
        %v897 = vld [vmem:[#allocation8 + $0x18] sm:$0xf]
        %v898 = vld [vmem:[#allocation8 + $0x1c] sm:$0xf]
        %v899 = vld [vmem:[#allocation8 + $0x20] sm:$0xf]
        %v900 = vld [vmem:[#allocation8 + $0x24] sm:$0xf]
        %v901 = vld [vmem:[#allocation8 + $0x28] sm:$0xf]
        %v902 = vld [vmem:[#allocation8 + $0x2c] sm:$0xf]
        %v903 = vld [vmem:[#allocation8 + $0x30] sm:$0xf]
        %v904 = vld [vmem:[#allocation8 + $0x34] sm:$0xf]
        %v905 = vld [vmem:[#allocation8 + $0x38] sm:$0xf]
        %v906 = vld [vmem:[#allocation8 + $0x3c] sm:$0xf]
        %v923 = vunpack.c.l.b16 %v891
        %v924 = vunpack.c.l.b16 %v892
        %v925 = vunpack.c.l.b16 %v893
        %v926 = vunpack.c.l.b16 %v894
        %v927 = vunpack.c.l.b16 %v895
        %v928 = vunpack.c.l.b16 %v896
        %v929 = vunpack.c.l.b16 %v897
        %v930 = vunpack.c.l.b16 %v898
        %v931 = vunpack.c.l.b16 %v899
        %v932 = vunpack.c.l.b16 %v900
        %v933 = vunpack.c.l.b16 %v901
        %v934 = vunpack.c.l.b16 %v902
        %v935 = vunpack.c.l.b16 %v903
        %v936 = vunpack.c.l.b16 %v904
        %v937 = vunpack.c.l.b16 %v905
        %v938 = vunpack.c.l.b16 %v906
        %v939 = vpack.c.b16 %v924, %v923
        %v940 = vpack.c.b16 %v926, %v925
        %v941 = vpack.c.b16 %v928, %v927
        %v942 = vpack.c.b16 %v930, %v929
        %v943 = vpack.c.b16 %v932, %v931
        %v944 = vpack.c.b16 %v934, %v933
        %v945 = vpack.c.b16 %v936, %v935
        %v946 = vpack.c.b16 %v938, %v937
        %955 = vmatprep.subr.bf16.mxu0 0
        %956 = vmatpush1.bf16.msra.mxu0 %v939
        %957 = vmatprep.subr.bf16.mxu0 0
        %958 = vmatpush1.bf16.msra.mxu0 %v940
        %959 = vmatprep.subr.bf16.mxu0 0
        %960 = vmatpush1.bf16.msra.mxu0 %v941
        %961 = vmatprep.subr.bf16.mxu0 0
        %962 = vmatpush1.bf16.msra.mxu0 %v942
        %963 = vmatprep.subr.bf16.mxu0 0
        %964 = vmatpush1.bf16.msra.mxu0 %v943
        %965 = vmatprep.subr.bf16.mxu0 0
        %966 = vmatpush1.bf16.msra.mxu0 %v944
        %967 = vmatprep.subr.bf16.mxu0 0
        %968 = vmatpush1.bf16.msra.mxu0 %v945
        %969 = vmatprep.subr.bf16.mxu0 0
        %970 = vmatpush1.bf16.msra.mxu0 %v946
        %971 = vmatprep.subr.bf16.mxu0 0
        %972 = vmatpush1.bf16.msra.mxu0 0
        %973 = vmatprep.subr.bf16.mxu0 0
        %974 = vmatpush1.bf16.msra.mxu0 0
        %975 = vmatprep.subr.bf16.mxu0 0
        %976 = vmatpush1.bf16.msra.mxu0 0
        %977 = vmatprep.subr.bf16.mxu0 0
        %978 = vmatpush1.bf16.msra.mxu0 0
        %979 = vmatprep.subr.bf16.mxu0 0
        %980 = vmatpush1.bf16.msra.mxu0 0
        %981 = vmatprep.subr.bf16.mxu0 0
        %982 = vmatpush1.bf16.msra.mxu0 0
        %983 = vmatprep.subr.bf16.mxu0 0
        %984 = vmatpush1.bf16.msra.mxu0 0
        %985 = vmatprep.subr.bf16.mxu0 0
        %986 = vmatpush1.bf16.msra.mxu0 0
        %987 = vmatprep.mubr.bf16.mxu0 0
        %988 = vmatmul.mubr.bf16.gmra.mrb[0].mxu0 %v890
        %v989 = vpop.f32.mrb[0].mxu0
        %v990 = vadd.f32 0.0, %v989
        %v991 = vpop.f32.mrb[0].mxu0
        %v992 = vpop.f32.mrb[0].mxu0
        %v993 = vadd.f32 0.0, %v992
        %v994 = vpop.f32.mrb[0].mxu0
        %995 = vdwg.mxu0
        %996 = vmatprep.subr.bf16.mxu0 0
        %997 = vmatpush1.bf16.msra.mxu0 %v939
        %998 = vmatprep.subr.bf16.mxu0 0
        %999 = vmatpush1.bf16.msra.mxu0 %v940
        %1000 = vmatprep.subr.bf16.mxu0 0
        %1001 = vmatpush1.bf16.msra.mxu0 %v941
        %1002 = vmatprep.subr.bf16.mxu0 0
        %1003 = vmatpush1.bf16.msra.mxu0 %v942
        %1004 = vmatprep.subr.bf16.mxu0 0
        %1005 = vmatpush1.bf16.msra.mxu0 %v943
        %1006 = vmatprep.subr.bf16.mxu0 0
        %1007 = vmatpush1.bf16.msra.mxu0 %v944
        %1008 = vmatprep.subr.bf16.mxu0 0
        %1009 = vmatpush1.bf16.msra.mxu0 %v945
        %1010 = vmatprep.subr.bf16.mxu0 0
        %1011 = vmatpush1.bf16.msra.mxu0 %v946
        %1012 = vmatprep.subr.bf16.mxu0 0
        %1013 = vmatpush1.bf16.msra.mxu0 0
        %1014 = vmatprep.subr.bf16.mxu0 0
        %1015 = vmatpush1.bf16.msra.mxu0 0
        %1016 = vmatprep.subr.bf16.mxu0 0
        %1017 = vmatpush1.bf16.msra.mxu0 0
        %1018 = vmatprep.subr.bf16.mxu0 0
        %1019 = vmatpush1.bf16.msra.mxu0 0
        %1020 = vmatprep.subr.bf16.mxu0 0
        %1021 = vmatpush1.bf16.msra.mxu0 0
        %1022 = vmatprep.subr.bf16.mxu0 0
        %1023 = vmatpush1.bf16.msra.mxu0 0
        %1024 = vmatprep.subr.bf16.mxu0 0
        %1025 = vmatpush1.bf16.msra.mxu0 0
        %1026 = vmatprep.subr.bf16.mxu0 0
        %1027 = vmatpush1.bf16.msra.mxu0 0
        %1028 = vmatprep.mubr.bf16.mxu0 0
        %1029 = vmatmul.mubr.bf16.gmra.mrb[0].mxu0 %v885
        %v1030 = vpop.f32.mrb[0].mxu0
        %v1031 = vadd.f32 %v990, %v1030
        %v1032 = vpop.f32.mrb[0].mxu0
        %v1033 = vpop.f32.mrb[0].mxu0
        %v1034 = vadd.f32 %v993, %v1033
        %v1035 = vpop.f32.mrb[0].mxu0
        %1036 = vdwg.mxu0
        %v1037 = vld [vmem:[#allocation10] sm:$0xf]
        %v1038 = vld [vmem:[#allocation10 + $0x4] sm:$0xf]
        %v1039 = vld [vmem:[#allocation10 + $0x8] sm:$0xf]
        %v1040 = vld [vmem:[#allocation10 + $0xc] sm:$0xf]
        %v1041 = vld [vmem:[#allocation10 + $0x10] sm:$0xf]
        %v1042 = vld [vmem:[#allocation10 + $0x14] sm:$0xf]
        %v1043 = vld [vmem:[#allocation10 + $0x18] sm:$0xf]
        %v1044 = vld [vmem:[#allocation10 + $0x1c] sm:$0xf]
        %v1045 = vld [vmem:[#allocation10 + $0x20] sm:$0xf]
        %v1046 = vld [vmem:[#allocation10 + $0x24] sm:$0xf]
        %v1047 = vld [vmem:[#allocation10 + $0x28] sm:$0xf]
        %v1048 = vld [vmem:[#allocation10 + $0x2c] sm:$0xf]
        %v1049 = vld [vmem:[#allocation10 + $0x30] sm:$0xf]
        %v1050 = vld [vmem:[#allocation10 + $0x34] sm:$0xf]
        %v1051 = vld [vmem:[#allocation10 + $0x38] sm:$0xf]
        %v1052 = vld [vmem:[#allocation10 + $0x3c] sm:$0xf]
        %v1069 = vunpack.c.l.b16 %v1037
        %v1070 = vunpack.c.l.b16 %v1038
        %v1071 = vunpack.c.l.b16 %v1039
        %v1072 = vunpack.c.l.b16 %v1040
        %v1073 = vunpack.c.l.b16 %v1041
        %v1074 = vunpack.c.l.b16 %v1042
        %v1075 = vunpack.c.l.b16 %v1043
        %v1076 = vunpack.c.l.b16 %v1044
        %v1077 = vunpack.c.l.b16 %v1045
        %v1078 = vunpack.c.l.b16 %v1046
        %v1079 = vunpack.c.l.b16 %v1047
        %v1080 = vunpack.c.l.b16 %v1048
        %v1081 = vunpack.c.l.b16 %v1049
        %v1082 = vunpack.c.l.b16 %v1050
        %v1083 = vunpack.c.l.b16 %v1051
        %v1084 = vunpack.c.l.b16 %v1052
        %v1085 = vpack.c.b16 %v1070, %v1069
        %v1086 = vpack.c.b16 %v1072, %v1071
        %v1087 = vpack.c.b16 %v1074, %v1073
        %v1088 = vpack.c.b16 %v1076, %v1075
        %v1089 = vpack.c.b16 %v1078, %v1077
        %v1090 = vpack.c.b16 %v1080, %v1079
        %v1091 = vpack.c.b16 %v1082, %v1081
        %v1092 = vpack.c.b16 %v1084, %v1083
        %1101 = vmatprep.subr.bf16.mxu0 0
        %1102 = vmatpush1.bf16.msra.mxu0 %v1085
        %1103 = vmatprep.subr.bf16.mxu0 0
        %1104 = vmatpush1.bf16.msra.mxu0 %v1086
        %1105 = vmatprep.subr.bf16.mxu0 0
        %1106 = vmatpush1.bf16.msra.mxu0 %v1087
        %1107 = vmatprep.subr.bf16.mxu0 0
        %1108 = vmatpush1.bf16.msra.mxu0 %v1088
        %1109 = vmatprep.subr.bf16.mxu0 0
        %1110 = vmatpush1.bf16.msra.mxu0 %v1089
        %1111 = vmatprep.subr.bf16.mxu0 0
        %1112 = vmatpush1.bf16.msra.mxu0 %v1090
        %1113 = vmatprep.subr.bf16.mxu0 0
        %1114 = vmatpush1.bf16.msra.mxu0 %v1091
        %1115 = vmatprep.subr.bf16.mxu0 0
        %1116 = vmatpush1.bf16.msra.mxu0 %v1092
        %1117 = vmatprep.subr.bf16.mxu0 0
        %1118 = vmatpush1.bf16.msra.mxu0 0
        %1119 = vmatprep.subr.bf16.mxu0 0
        %1120 = vmatpush1.bf16.msra.mxu0 0
        %1121 = vmatprep.subr.bf16.mxu0 0
        %1122 = vmatpush1.bf16.msra.mxu0 0
        %1123 = vmatprep.subr.bf16.mxu0 0
        %1124 = vmatpush1.bf16.msra.mxu0 0
        %1125 = vmatprep.subr.bf16.mxu0 0
        %1126 = vmatpush1.bf16.msra.mxu0 0
        %1127 = vmatprep.subr.bf16.mxu0 0
        %1128 = vmatpush1.bf16.msra.mxu0 0
        %1129 = vmatprep.subr.bf16.mxu0 0
        %1130 = vmatpush1.bf16.msra.mxu0 0
        %1131 = vmatprep.subr.bf16.mxu0 0
        %1132 = vmatpush1.bf16.msra.mxu0 0
        %1133 = vmatprep.mubr.bf16.mxu0 0
        %1134 = vmatmul.mubr.bf16.gmra.mrb[0].mxu0 %v885
        %v1135 = vpop.f32.mrb[0].mxu0
        %v1136 = vadd.f32 0.0, %v1135
        %v1137 = vpop.f32.mrb[0].mxu0
        %v1138 = vpop.f32.mrb[0].mxu0
        %v1139 = vadd.f32 0.0, %v1138
        %v1140 = vpop.f32.mrb[0].mxu0
        %1141 = vdwg.mxu0
        %v1142 = vadd.f32 %v1031, %v1136
        %v1143 = vadd.f32 %v1034, %v1139
        %v1144 = vadd.f32 %v1142, 1e-10
        %v1145 = vadd.f32 %v1143, 1e-10
        %v1146 = vlog2.pop %v1144
        %v1147 = vmul.f32 %v1146, 0.6931472
        %v1148 = vlog2.pop %v1145
        %v1149 = vmul.f32 %v1148, 0.6931472
        %vm1150 = vcmp.eq.s32.totalorder %v336, 0
        %1152 = vset.pattern.permute.xlu0 127
        %1153 = vperm.xlu0 %1152, %v324
        %v1154 = vpop.permute.xlu0 %1153
        %1157 = vset.pattern.permute.xlu0 127
        %1158 = vperm.xlu0 %1157, %v326
        %v1159 = vpop.permute.xlu0 %1158
        %v1161 = vsel %vm1150, %v1154, %v1147
        %v1162 = vsel %vm1150, %v1159, %v1149
        %1163 = vst [vmem:[%s301] sm:$0xff] %v1161
        %1164 = vst [vmem:[%s301 + $0x8] sm:$0xff] %v1162
        %s1165 = sand.u32 %s142, 1
        %s1166 = scalar_lea.sflag [#allocation4], %s1165
        %s1167 = sand.u32 %s142, 1
        %s1168 = smul.addr %s1167, 16
        %s1169 = scalar_lea.vmem [#allocation11], %s1168
        // Predicated region
        $region61: #{tpu_custom_call.1} parent=39 // pred_check
          %p1170 = pneg %p152
        $region62: #{tpu_custom_call.1} parent=39 // pred_check_branch
          %1172 = sbr.rel (%p1170) target = $region64
        $region63: #{tpu_custom_call.1} parent=39 // pred_region
          %s1173 = smul.u32 2, %s24
          %s1175 = ssub.s32 256, 256
          %1176 = vsyncadd %s1166, %s1175
          %s1177 = smul.addr %s1173, 128
          %s1178 = scalar_lea.hbm %s5, %s1177
          %s1179 = sshll.u32 %s1169, 4
          %s1180 = int_to_ptr.vmem [resolvable:$true] %s1179
          %1185 = dma.vmem_to_hbm [thread:$0]  %s1180, 256, %s1178, %s1166, 128, 128, 8
        $region64: #{tpu_custom_call.1} parent=39 // pred_fallthru
          _
      $region40: #{tpu_custom_call.1} parent=5 // pred_fallthru
        _
      %p1186 = scmp.le.s32.totalorder 2, %s19
      // Predicated region
      $region65: #{tpu_custom_call.1} parent=5 // pred_check
        %p1187 = pneg %p1186
      $region66: #{tpu_custom_call.1} parent=5 // pred_check_branch
        %1189 = sbr.rel (%p1187) target = $region68
      $region67: #{tpu_custom_call.1} parent=5 // pred_region
        %s1190 = ssub.s32 %s19, 2
        // Predicated region
        $region69: #{tpu_custom_call.1} parent=67 // pred_check
          %p1191 = pneg %p158
        $region70: #{tpu_custom_call.1} parent=67 // pred_check_branch
          %1193 = sbr.rel (%p1191) target = $region72
        $region71: #{tpu_custom_call.1} parent=67 // pred_region
          %s1194 = sand.u32 %s143, 1
          %s1195 = scalar_lea.sflag [#allocation4], %s1194
          %s1196 = sand.u32 %s143, 1
          %s1197 = smul.addr %s1196, 16
          %s1198 = scalar_lea.vmem [#allocation11], %s1197
          %1199 = dma.done %s1195, 256
        $region72: #{tpu_custom_call.1} parent=67 // pred_fallthru
          _
      $region68: #{tpu_custom_call.1} parent=5 // pred_fallthru
        _
    $region6: #{tpu_custom_call.1} parent=1 // loop_footer
      %s23 = sadd.s32 1, %s19
    $region7: #{tpu_custom_call.1} parent=1 // loop_footer_branch
      %18 = sbr.rel target = $region3
    $region8: #{tpu_custom_call.1} parent=1 // loop_exit
      _
    %1200 = vsyncpa [#allocation3], 1
    %s1201 = scalar_lea.sflag [#allocation3], 1
    %1202 = vsyncpa %s1201, 1
    %1203 = vsyncpa [#allocation6], 1
    %1204 = vsyncpa [#allocation9], 1
    %1205 = vsyncpa [#allocation4], 1
    %s1206 = scalar_lea.sflag [#allocation4], 1
    %1207 = vsyncpa %s1206, 1

</llo_original>
